<compile_context>
chip_gen: v7x
topology: tpu7x:2x2x1
jax: 0.10.0
libtpu: 0.0.40
codegen_flags: <defaults>
</compile_context>

<pallas_src>
import jax
import jax.numpy as jnp
from jax.experimental import pallas as pl
from jax.experimental.pallas import tpu as pltpu


def _tp_mlp_kernel(x_ref, guw_ref, dw_ref, o_ref, acc_ref=None):
    """One grid step: (token tile m, intermediate sub-block i).

    x_ref  : (TM, H)            token tile (compute dtype), resident across i
    guw_ref: (1, H, 2*I_tile)   packed [gate | up] weights, pre-transposed
    dw_ref : (1, I_tile, H)     down-proj weights for this sub-block, pre-transposed
    o_ref  : (TM, H)            output tile (same block across the i axis)
    acc_ref: (TM, H) f32        scratch accumulator, only when o dtype != f32
    """
    i = pl.program_id(1)
    acc = o_ref if acc_ref is None else acc_ref

    @pl.when(i == 0)
    def _():
        acc[...] = jnp.zeros_like(acc)

    x = x_ref[...]                                           # (TM, H)

    # Fused gate+up projection on the MXU, native orientation (no transpose).
    gu = jnp.dot(x, guw_ref[0], preferred_element_type=jnp.float32)  # (TM, 2*I_tile)
    it = gu.shape[1] // 2
    g = gu[:, :it]
    u = gu[:, it:]

    # SiLU(gate) * up  (VPU + EUP), f32
    h = (g * jax.nn.sigmoid(g)) * u                          # (TM, I_tile)

    # Down projection for this sub-block, accumulated over the reduction axis.
    acc[...] += jnp.dot(h.astype(dw_ref.dtype), dw_ref[0],
                        preferred_element_type=jnp.float32).astype(acc.dtype)

    if acc_ref is not None:
        @pl.when(i == pl.num_programs(1) - 1)
        def _():
            o_ref[...] = acc_ref[...].astype(o_ref.dtype)


def tp_parallel_llama_mlp(hidden_states, gate_w, up_w, down_w,
                          *, tm=256, i_tile=512, compute_dtype=None):
    """hidden_states: (B, T, H); weights as documented in the layout comment."""
    B, T, H = hidden_states.shape
    num_blocks, I_slice, _ = gate_w.shape
    out_dtype = hidden_states.dtype
    compute_dtype = compute_dtype if compute_dtype is not None else out_dtype

    # --- token (M) tiling -------------------------------------------------
    M = B * T
    TM = min(tm, M)
    TM = max(8, ((TM + 7) // 8) * 8)
    M_pad = ((M + TM - 1) // TM) * TM
    x = hidden_states.reshape(M, H)
    if M_pad != M:
        x = jnp.pad(x, ((0, M_pad - M), (0, 0)))
    x = x.astype(compute_dtype)

    # --- intermediate (I) tiling -------------------------------------------
    # Splitting I_slice into sub-tiles just increases the number of reduction
    # steps; the block-sum over the intermediate dim is unchanged.
    I_tile = min(i_tile, I_slice)
    if I_slice % I_tile != 0:
        I_tile = I_slice
    NB = num_blocks * (I_slice // I_tile)

    # --- host-side weight packing (done once, outside the kernel) ----------
    gw = gate_w.reshape(NB, I_tile, H)
    uw = up_w.reshape(NB, I_tile, H)
    guw = jnp.concatenate([gw, uw], axis=1)                       # (NB, 2*I_tile, H)
    guw_t = jnp.transpose(guw, (0, 2, 1)).astype(compute_dtype)   # (NB, H, 2*I_tile)
    dwt = jnp.transpose(down_w, (0, 2, 1)).reshape(NB, I_tile, H)
    dwt = dwt.astype(compute_dtype)                               # (NB, I_tile, H)

    use_scratch = out_dtype != jnp.float32
    scratch_shapes = [pltpu.VMEM((TM, H), jnp.float32)] if use_scratch else []

    # Rough VMEM budget: double-buffered weight tiles + x/out(/acc) tiles.
    cb = jnp.dtype(compute_dtype).itemsize
    ob = jnp.dtype(out_dtype).itemsize
    est = 2 * (H * 2 * I_tile + I_tile * H) * cb
    est += 2 * TM * H * cb + 2 * TM * H * ob + (TM * H * 4 if use_scratch else 0)
    vmem_limit = int(min(max(2 * est, 32 * 2**20), 64 * 2**20))

    out = pl.pallas_call(
        _tp_mlp_kernel,
        out_shape=jax.ShapeDtypeStruct((M_pad, H), out_dtype),
        grid_spec=pltpu.PrefetchScalarGridSpec(
            num_scalar_prefetch=0,
            grid=(M_pad // TM, NB),
            in_specs=[
                pl.BlockSpec((TM, H), lambda m, i: (m, 0)),                 # x tile
                pl.BlockSpec((1, H, 2 * I_tile), lambda m, i: (i, 0, 0)),   # gate|up
                pl.BlockSpec((1, I_tile, H), lambda m, i: (i, 0, 0)),       # down
            ],
            out_specs=pl.BlockSpec((TM, H), lambda m, i: (m, 0)),           # accumulator
            scratch_shapes=scratch_shapes,
        ),
        compiler_params=pltpu.CompilerParams(
            dimension_semantics=("parallel", "arbitrary"),
            vmem_limit_bytes=vmem_limit,
        ),
    )(x, guw_t, dwt)

    # world_size == 1 -> dist.all_reduce is the identity.
    # TODO(synk): for world_size > 1, finish with jax.lax.psum (or a Pallas
    # remote-DMA ring via pltpu.make_async_remote_copy) over the TP axis.
    return out[:M].reshape(B, T, H)


def _reference(hidden_states, gate_w, up_w, down_w):
    """Pure-JAX reference mirroring the PyTorch forward."""
    B, T, H = hidden_states.shape
    num_blocks, I_slice, _ = gate_w.shape
    x = hidden_states.reshape(B * T, H)
    gw_full = gate_w.reshape(num_blocks * I_slice, H)
    uw_full = up_w.reshape(num_blocks * I_slice, H)
    h = jax.nn.silu(x @ gw_full.T) * (x @ uw_full.T)           # (M, nb*I)
    h = h.reshape(B * T, num_blocks, I_slice)
    outs = [h[:, i, :] @ down_w[i].T for i in range(num_blocks)]
    return sum(outs).reshape(B, T, H)


if __name__ == "__main__":
    # Small shapes consistent with the module (config.mlp_bias = False,
    # world_size = 1): hidden_size=128, intermediate_size=128, num_blocks=2.
    B, T, H = 2, 8, 128
    intermediate_size = 128
    num_blocks = 2
    world_size = 1
    I_slice = intermediate_size // world_size

    key = jax.random.PRNGKey(0)
    k_x, k_g, k_u, k_d = jax.random.split(key, 4)

    hidden_states = jax.random.normal(k_x, (B, T, H), dtype=jnp.float32)
    gate_w = 0.02 * jax.random.normal(k_g, (num_blocks, I_slice, H), dtype=jnp.float32)
    up_w = 0.02 * jax.random.normal(k_u, (num_blocks, I_slice, H), dtype=jnp.float32)
    down_w = 0.02 * jax.random.normal(k_d, (num_blocks, H, I_slice), dtype=jnp.float32)

    # f32 path (no scratch; accumulate directly into the resident output tile).
    out = tp_parallel_llama_mlp(hidden_states, gate_w, up_w, down_w)
    out = jax.block_until_ready(out)
    ref = _reference(hidden_states, gate_w, up_w, down_w)
    assert out.shape == (B, T, H)
    assert jnp.allclose(out, ref, atol=1e-4, rtol=1e-4), "f32 mismatch vs reference"

    # bf16 path (bf16 weights/activations on the MXU, f32 scratch accumulator).
    hs_bf = hidden_states.astype(jnp.bfloat16)
    gw_bf = gate_w.astype(jnp.bfloat16)
    uw_bf = up_w.astype(jnp.bfloat16)
    dw_bf = down_w.astype(jnp.bfloat16)
    out_bf = tp_parallel_llama_mlp(hs_bf, gw_bf, uw_bf, dw_bf)
    out_bf = jax.block_until_ready(out_bf)
    ref_bf = _reference(hs_bf.astype(jnp.float32), gw_bf.astype(jnp.float32),
                        uw_bf.astype(jnp.float32), dw_bf.astype(jnp.float32))
    assert out_bf.dtype == jnp.bfloat16
    assert jnp.allclose(out_bf.astype(jnp.float32), ref_bf, atol=3e-3, rtol=3e-2), \
        "bf16 mismatch vs reference"

    print("KERNEL_OK")
</pallas_src>

<mosaic_0001>
module attributes {stable_mosaic.version = 11 : i64} {
  func.func @_tp_mlp_kernel(%arg0: i32, %arg1: i32, %arg2: memref<16x128xf32, #tpu.memory_space<vmem>>, %arg3: memref<1x128x256xf32, #tpu.memory_space<vmem>>, %arg4: memref<1x128x128xf32, #tpu.memory_space<vmem>>, %arg5: memref<16x128xf32, #tpu.memory_space<vmem>>) attributes {dimension_semantics = [#tpu.dimension_semantics<parallel>, #tpu.dimension_semantics<arbitrary>], iteration_bounds = array<i64: 1, 2>, scalar_prefetch = 0 : i64, scratch_operands = 0 : i64, tpu.core_type = #tpu.core_type<tc>, window_params = [{transform_indices = @transform_0, window_bounds = array<i64: 16, 128>}, {transform_indices = @transform_1, window_bounds = array<i64: 1, 128, 256>}, {transform_indices = @transform_2, window_bounds = array<i64: 1, 128, 128>}, {transform_indices = @transform_3, window_bounds = array<i64: 16, 128>}]} {
    %c0_i32 = arith.constant 0 : i32
    %0 = arith.cmpi eq, %arg1, %c0_i32 : i32
    %1 = arith.extui %0 : i1 to i32
    %c0_i32_0 = arith.constant 0 : i32
    %2 = arith.cmpi ne, %1, %c0_i32_0 : i32
    scf.if %2 {
      %cst_14 = arith.constant 0.000000e+00 : f32
      %22 = vector.broadcast %cst_14 : f32 to vector<16x128xf32>
      %c0_15 = arith.constant 0 : index
      %c0_16 = arith.constant 0 : index
      %23 = vector.load %arg5[%c0_15, %c0_16] : memref<16x128xf32, #tpu.memory_space<vmem>>, vector<16x128xf32>
      tpu.vector_store %arg5[%c0_15, %c0_16], %22 {strides = array<i32>} : memref<16x128xf32, #tpu.memory_space<vmem>>, vector<16x128xf32>,
    } else {
    }
    %c0 = arith.constant 0 : index
    %c0_1 = arith.constant 0 : index
    %3 = vector.load %arg2[%c0, %c0_1] : memref<16x128xf32, #tpu.memory_space<vmem>>, vector<16x128xf32>
    %c0_2 = arith.constant 0 : index
    %c0_3 = arith.constant 0 : index
    %c0_4 = arith.constant 0 : index
    %4 = vector.load %arg3[%c0_2, %c0_3, %c0_4] : memref<1x128x256xf32, #tpu.memory_space<vmem>>, vector<1x128x256xf32>
    %5 = vector.shape_cast %4 : vector<1x128x256xf32> to vector<128x256xf32>
    %cst = arith.constant dense<0.000000e+00> : vector<16x256xf32>
    %6 = tpu.matmul %3, %5, %cst {dimension_numbers = #tpu.dot_dimension_numbers<[1], [0], [0], [1], [0, 0, 1, 1], [], []>} : vector<16x128xf32>, vector<128x256xf32>, vector<16x256xf32> -> vector<16x256xf32>
    %7 = vector.extract_strided_slice %6 {offsets = [0, 0], sizes = [16, 128], strides = [1, 1]} : vector<16x256xf32> to vector<16x128xf32>
    %8 = vector.extract_strided_slice %6 {offsets = [0, 128], sizes = [16, 128], strides = [1, 1]} : vector<16x256xf32> to vector<16x128xf32>
    %9 = arith.negf %7 : vector<16x128xf32>
    %10 = math.exp %9 : vector<16x128xf32>
    %cst_5 = arith.constant 1.000000e+00 : f32
    %11 = vector.broadcast %cst_5 : f32 to vector<16x128xf32>
    %12 = arith.addf %11, %10 : vector<16x128xf32>
    %13 = arith.divf %11, %12 : vector<16x128xf32>
    %14 = arith.mulf %7, %13 : vector<16x128xf32>
    %15 = arith.mulf %14, %8 : vector<16x128xf32>
    %c0_6 = arith.constant 0 : index
    %c0_7 = arith.constant 0 : index
    %16 = vector.load %arg5[%c0_6, %c0_7] : memref<16x128xf32, #tpu.memory_space<vmem>>, vector<16x128xf32>
    %c0_8 = arith.constant 0 : index
    %c0_9 = arith.constant 0 : index
    %c0_10 = arith.constant 0 : index
    %17 = vector.load %arg4[%c0_8, %c0_9, %c0_10] : memref<1x128x128xf32, #tpu.memory_space<vmem>>, vector<1x128x128xf32>
    %18 = vector.shape_cast %17 : vector<1x128x128xf32> to vector<128x128xf32>
    %cst_11 = arith.constant dense<0.000000e+00> : vector<16x128xf32>
    %19 = tpu.matmul %15, %18, %cst_11 {dimension_numbers = #tpu.dot_dimension_numbers<[1], [0], [0], [1], [0, 0, 1, 1], [], []>} : vector<16x128xf32>, vector<128x128xf32>, vector<16x128xf32> -> vector<16x128xf32>
    %20 = arith.addf %16, %19 : vector<16x128xf32>
    %c0_12 = arith.constant 0 : index
    %c0_13 = arith.constant 0 : index
    %21 = vector.load %arg5[%c0_12, %c0_13] : memref<16x128xf32, #tpu.memory_space<vmem>>, vector<16x128xf32>
    tpu.vector_store %arg5[%c0_12, %c0_13], %20 {strides = array<i32>} : memref<16x128xf32, #tpu.memory_space<vmem>>, vector<16x128xf32>,
    return
  }
  func.func @transform_0(%arg0: i32, %arg1: i32) -> (i32, i32) {
    %c0_i32 = arith.constant 0 : i32
    %c0_i32_0 = arith.constant 0 : i32
    return %arg0, %c0_i32 : i32, i32
  }
  func.func @transform_1(%arg0: i32, %arg1: i32) -> (i32, i32, i32) {
    %c0_i32 = arith.constant 0 : i32
    %c0_i32_0 = arith.constant 0 : i32
    %c0_i32_1 = arith.constant 0 : i32
    return %arg1, %c0_i32, %c0_i32_0 : i32, i32, i32
  }
  func.func @transform_2(%arg0: i32, %arg1: i32) -> (i32, i32, i32) {
    %c0_i32 = arith.constant 0 : i32
    %c0_i32_0 = arith.constant 0 : i32
    %c0_i32_1 = arith.constant 0 : i32
    return %arg1, %c0_i32, %c0_i32_0 : i32, i32, i32
  }
  func.func @transform_3(%arg0: i32, %arg1: i32) -> (i32, i32) {
    %c0_i32 = arith.constant 0 : i32
    %c0_i32_0 = arith.constant 0 : i32
    return %arg0, %c0_i32 : i32, i32
  }
}

</mosaic_0001>

<llo_original>
// kernel: tpu_custom_call.1
$region0: #{tpu_custom_call.1}
  #allocation0 [shape = 'u32[]', space=smem, size = 0x4, offset = 0x4, fixed_abs, tag = 'smem constant byte address 0x4 - core index']
  #allocation1 [shape = 'u32[144,128]{1,0:T(1,128)}', space=vmem, size = 0x12000, scoped, tag = 'internal scratch']
  %s0 = inlined_call_operand.hbm [shape: f32[16,128], index: 0, kind: input, shape index: {}]
  %s1 = inlined_call_operand.hbm [shape: f32[2,128,256], index: 1, kind: input, shape index: {}]
  %s2 = inlined_call_operand.hbm [shape: f32[2,128,128], index: 2, kind: input, shape index: {}]
  %s3 = inlined_call_operand.hbm [shape: f32[16,128], index: 3, kind: output, shape index: {}]
  %s4 = sld [smem:[#allocation0]]
  $region61: #{tpu_custom_call.1} parent=0
    _
  %s6 = ssub.s32 1, %s4
  %s7 = scalar_select 0, %s6, %s4
  $region1: #{tpu_custom_call.1} parent=0
    #allocation2 [shape = 'u8[8192]{0}', space=vmem, size = 0x2000, scoped, tag = 'input window, operand 0, single buffered']
    #allocation3 [shape = 's32[2]{0}', space=sflag, size = 0x8, scoped, tag = 'scoped memory for tpu_custom_call.1']
    #allocation4 [shape = 's32[2]{0}', space=sflag, size = 0x8, scoped, tag = 'scoped memory for tpu_custom_call.1']
    #allocation5 [shape = 'u8[262144]{0}', space=vmem, size = 0x40000, scoped, tag = 'input window, operand 1']
    #allocation6 [shape = 's32[2]{0}', space=sflag, size = 0x8, scoped, tag = 'scoped memory for tpu_custom_call.1']
    #allocation7 [shape = 'u8[131072]{0}', space=vmem, size = 0x20000, scoped, tag = 'input window, operand 2']
    #allocation8 [shape = 'u8[8192]{0}', space=vmem, size = 0x2000, scoped, tag = 'output window, operand 0, single buffered']
    %8 = vsyncpa [#allocation3], 0
    %9 = vsyncpa [#allocation6], 0
    %s10 = scalar_lea.sflag [#allocation6], 1
    %11 = vsyncpa %s10, 0
    %12 = vsyncpa [#allocation4], 0
    loop: start=0, step=1, limit=4
    $region2: #{tpu_custom_call.1} parent=1 // loop_pre_header
      _
    $region3: #{tpu_custom_call.1} parent=1 // loop_header
      %s14 = sphi 0, %s18
      %p15 = scmp.ge.s32.totalorder %s14, 4
      %s21 = sphi 0, %s33
      %s22 = sphi 0, %s29
      %s23 = sphi 0, %s21
      %s24 = sphi 0, %s22
      %s25 = sphi 0, %s23
      %s26 = sphi 0, %s24
      %s36 = sphi 0, %s38
      %s39 = sphi 0, %s36
      %s40 = sphi 0, %s39
      %s56 = sphi 0, %s40
      %s62 = sphi 0, %s64
      %s65 = sphi 0, %s62
      %s66 = sphi 0, %s65
      %s82 = sphi 0, %s66
      %s88 = sphi 0, %s90
      %s91 = sphi 0, %s88
      %s92 = sphi 0, %s91
      %s108 = sphi 0, %s92
      %s114 = sphi 0, %s116
      %s117 = sphi 0, %s114
      %s118 = sphi 0, %s117
      %s134 = sphi 0, %s118
    $region4: #{tpu_custom_call.1} parent=1 // loop_header_branch
      %17 = sbr.rel (%p15) target = $region8
    $region5: #{tpu_custom_call.1} parent=1 // loop_body
      %s19 = ssub.s32 %s14, 1
      %s20 = ssub.s32 %s14, 2
      %s27 = sadd.s32 1, %s22
      %p28 = scmp.ge.s32.totalorder %s27, 2
      %s29 = scalar_select %p28, 0, %s27
      %s30 = sadd.s32 1, %s21
      %s31 = scalar_select %p28, %s30, %s21
      %p32 = scmp.ge.s32.totalorder %s31, 1
      %s33 = scalar_select %p32, 0, %s31
      %s34 = ssub.s32 %s21, %s33
      %p35 = scmp.eq.s32.totalorder %s34, 0
      %s37 = sadd.s32 %s36, 1
      %s38 = scalar_select %p35, %s36, %s37
      %p41 = pneg %p35
      %p42 = scmp.eq.s32.totalorder %s14, 1
      %p43 = por %p41, %p42
      %p44 = scmp.ne.s32.totalorder %s36, %s39
      %p45 = scmp.eq.s32.totalorder %s14, 0
      %p46 = por %p44, %p45
      %p47 = scmp.ne.s32.totalorder %s36, %s39
      %p48 = scmp.eq.s32.totalorder %s19, 1
      %p49 = por %p47, %p48
      %p50 = scmp.ne.s32.totalorder %s39, %s40
      %p51 = scmp.eq.s32.totalorder %s19, 0
      %p52 = por %p50, %p51
      %p53 = scmp.ne.s32.totalorder %s39, %s40
      %p54 = scmp.eq.s32.totalorder %s20, 1
      %p55 = por %p53, %p54
      %p57 = scmp.ne.s32.totalorder %s40, %s56
      %p58 = scmp.eq.s32.totalorder %s20, 0
      %p59 = por %p57, %p58
      %s60 = ssub.s32 %s22, %s29
      %p61 = scmp.eq.s32.totalorder %s60, 0
      %s63 = sadd.s32 %s62, 1
      %s64 = scalar_select %p61, %s62, %s63
      %p67 = pneg %p61
      %p68 = scmp.eq.s32.totalorder %s14, 1
      %p69 = por %p67, %p68
      %p70 = scmp.ne.s32.totalorder %s62, %s65
      %p71 = scmp.eq.s32.totalorder %s14, 0
      %p72 = por %p70, %p71
      %p73 = scmp.ne.s32.totalorder %s62, %s65
      %p74 = scmp.eq.s32.totalorder %s19, 1
      %p75 = por %p73, %p74
      %p76 = scmp.ne.s32.totalorder %s65, %s66
      %p77 = scmp.eq.s32.totalorder %s19, 0
      %p78 = por %p76, %p77
      %p79 = scmp.ne.s32.totalorder %s65, %s66
      %p80 = scmp.eq.s32.totalorder %s20, 1
      %p81 = por %p79, %p80
      %p83 = scmp.ne.s32.totalorder %s66, %s82
      %p84 = scmp.eq.s32.totalorder %s20, 0
      %p85 = por %p83, %p84
      %s86 = ssub.s32 %s22, %s29
      %p87 = scmp.eq.s32.totalorder %s86, 0
      %s89 = sadd.s32 %s88, 1
      %s90 = scalar_select %p87, %s88, %s89
      %p93 = pneg %p87
      %p94 = scmp.eq.s32.totalorder %s14, 1
      %p95 = por %p93, %p94
      %p96 = scmp.ne.s32.totalorder %s88, %s91
      %p97 = scmp.eq.s32.totalorder %s14, 0
      %p98 = por %p96, %p97
      %p99 = scmp.ne.s32.totalorder %s88, %s91
      %p100 = scmp.eq.s32.totalorder %s19, 1
      %p101 = por %p99, %p100
      %p102 = scmp.ne.s32.totalorder %s91, %s92
      %p103 = scmp.eq.s32.totalorder %s19, 0
      %p104 = por %p102, %p103
      %p105 = scmp.ne.s32.totalorder %s91, %s92
      %p106 = scmp.eq.s32.totalorder %s20, 1
      %p107 = por %p105, %p106
      %p109 = scmp.ne.s32.totalorder %s92, %s108
      %p110 = scmp.eq.s32.totalorder %s20, 0
      %p111 = por %p109, %p110
      %s112 = ssub.s32 %s21, %s33
      %p113 = scmp.eq.s32.totalorder %s112, 0
      %s115 = sadd.s32 %s114, 1
      %s116 = scalar_select %p113, %s114, %s115
      %p119 = pneg %p113
      %p120 = scmp.eq.s32.totalorder %s14, 1
      %p121 = por %p119, %p120
      %p122 = scmp.ne.s32.totalorder %s114, %s117
      %p123 = scmp.eq.s32.totalorder %s14, 0
      %p124 = por %p122, %p123
      %p125 = scmp.ne.s32.totalorder %s114, %s117
      %p126 = scmp.eq.s32.totalorder %s19, 1
      %p127 = por %p125, %p126
      %p128 = scmp.ne.s32.totalorder %s117, %s118
      %p129 = scmp.eq.s32.totalorder %s19, 0
      %p130 = por %p128, %p129
      %p131 = scmp.ne.s32.totalorder %s117, %s118
      %p132 = scmp.eq.s32.totalorder %s20, 1
      %p133 = por %p131, %p132
      %p135 = scmp.ne.s32.totalorder %s118, %s134
      %p136 = scmp.eq.s32.totalorder %s20, 0
      %p137 = por %p135, %p136
      %p138 = scmp.le.s32.totalorder 1, %s14
      %p139 = scmp.lt.s32.totalorder %s14, 3
      %p140 = pnand %p138, %p139
      %p141 = pneg %p140
      // Predicated region
      $region9: #{tpu_custom_call.1} parent=5 // pred_check
        _
      $region10: #{tpu_custom_call.1} parent=5 // pred_check_branch
        %143 = sbr.rel (%p140) target = $region12
      $region11: #{tpu_custom_call.1} parent=5 // pred_region
        %s144 = ssub.s32 %s14, 1
        // Predicated region
        $region13: #{tpu_custom_call.1} parent=11 // pred_check
          %p145 = pneg %p52
        $region14: #{tpu_custom_call.1} parent=11 // pred_check_branch
          %147 = sbr.rel (%p145) target = $region16
        $region15: #{tpu_custom_call.1} parent=11 // pred_region
          %s148 = smul.u32 2, %s23
          %s150 = ssub.s32 256, 256
          %151 = vsyncadd [#allocation3], %s150
          %s152 = smul.addr %s148, 128
          %s153 = scalar_lea.hbm %s0, %s152
          %s154 = sshll.u32 [#allocation2], 4
          %s155 = int_to_ptr.vmem [resolvable:$true] %s154
          %160 = dma.hbm_to_vmem [thread:$0]  %s153, 256, %s155, [#allocation3], 128, 128, 8
        $region16: #{tpu_custom_call.1} parent=11 // pred_fallthru
          _
      $region12: #{tpu_custom_call.1} parent=5 // pred_fallthru
        _
      %p161 = scmp.lt.s32.totalorder %s14, 2
      // Predicated region
      $region17: #{tpu_custom_call.1} parent=5 // pred_check
        %p162 = pneg %p161
      $region18: #{tpu_custom_call.1} parent=5 // pred_check_branch
        %164 = sbr.rel (%p162) target = $region20
      $region19: #{tpu_custom_call.1} parent=5 // pred_region
        // Predicated region
        $region21: #{tpu_custom_call.1} parent=19 // pred_check
          %p165 = pneg %p72
        $region22: #{tpu_custom_call.1} parent=19 // pred_check_branch
          %167 = sbr.rel (%p165) target = $region24
        $region23: #{tpu_custom_call.1} parent=19 // pred_region
          %s168 = sand.u32 %s14, 1
          %s169 = scalar_lea.sflag [#allocation6], %s168
          %s170 = sand.u32 %s62, 1
          %s171 = smul.addr %s170, 256
          %s172 = scalar_lea.vmem [#allocation5], %s171
          %s174 = ssub.s32 4096, 4096
          %175 = vsyncadd %s169, %s174
          %s176 = smul.addr %s22, 32
          %s177 = smul.addr %s176, 128
          %s178 = scalar_lea.hbm %s1, %s177
          %s179 = sshll.u32 %s172, 4
          %s180 = int_to_ptr.vmem [resolvable:$true] %s179
          %185 = dma.hbm_to_vmem [thread:$0]  %s178, 4096, %s180, %s169, 256, 256, 16
        $region24: #{tpu_custom_call.1} parent=19 // pred_fallthru
          _
        // Predicated region
        $region25: #{tpu_custom_call.1} parent=19 // pred_check
          %p186 = pneg %p98
        $region26: #{tpu_custom_call.1} parent=19 // pred_check_branch
          %188 = sbr.rel (%p186) target = $region28
        $region27: #{tpu_custom_call.1} parent=19 // pred_region
          %s189 = sand.u32 %s14, 1
          %s190 = scalar_lea.sflag [#allocation6], %s189
          %s191 = sand.u32 %s88, 1
          %s192 = smul.addr %s191, 128
          %s193 = scalar_lea.vmem [#allocation7], %s192
          %s195 = ssub.s32 2048, 2048
          %196 = vsyncadd %s190, %s195
          %s197 = smul.addr %s22, 16
          %s198 = smul.addr %s197, 128
          %s199 = scalar_lea.hbm %s2, %s198
          %s200 = sshll.u32 %s193, 4
          %s201 = int_to_ptr.vmem [resolvable:$true] %s200
          %206 = dma.hbm_to_vmem [thread:$0]  %s199, 2048, %s201, %s190, 128, 128, 8
        $region28: #{tpu_custom_call.1} parent=19 // pred_fallthru
          _
      $region20: #{tpu_custom_call.1} parent=5 // pred_fallthru
        _
      %p207 = scmp.le.s32.totalorder 1, %s14
      %p208 = scmp.lt.s32.totalorder %s14, 3
      %p209 = pnand %p207, %p208
      %p210 = pneg %p209
      // Predicated region
      $region29: #{tpu_custom_call.1} parent=5 // pred_check
        _
      $region30: #{tpu_custom_call.1} parent=5 // pred_check_branch
        %212 = sbr.rel (%p209) target = $region32
      $region31: #{tpu_custom_call.1} parent=5 // pred_region
        %s213 = ssub.s32 %s14, 1
        // Predicated region
        $region33: #{tpu_custom_call.1} parent=31 // pred_check
          %p214 = pneg %p52
        $region34: #{tpu_custom_call.1} parent=31 // pred_check_branch
          %216 = sbr.rel (%p214) target = $region36
        $region35: #{tpu_custom_call.1} parent=31 // pred_region
          %217 = dma.done [#allocation3], 256
        $region36: #{tpu_custom_call.1} parent=31 // pred_fallthru
          _
        %s218 = sand.u32 %s19, 1
        %s219 = scalar_lea.sflag [#allocation6], %s218
        %s220 = sand.u32 %s65, 1
        %s221 = smul.addr %s220, 256
        %s222 = scalar_lea.vmem [#allocation5], %s221
        // Predicated region
        $region37: #{tpu_custom_call.1} parent=31 // pred_check
          %p223 = pneg %p78
        $region38: #{tpu_custom_call.1} parent=31 // pred_check_branch
          %225 = sbr.rel (%p223) target = $region40
        $region39: #{tpu_custom_call.1} parent=31 // pred_region
          %226 = dma.done %s219, 4096
        $region40: #{tpu_custom_call.1} parent=31 // pred_fallthru
          _
        %s227 = sand.u32 %s19, 1
        %s228 = scalar_lea.sflag [#allocation6], %s227
        %s229 = sand.u32 %s91, 1
        %s230 = smul.addr %s229, 128
        %s231 = scalar_lea.vmem [#allocation7], %s230
        // Predicated region
        $region41: #{tpu_custom_call.1} parent=31 // pred_check
          %p232 = pneg %p104
        $region42: #{tpu_custom_call.1} parent=31 // pred_check_branch
          %234 = sbr.rel (%p232) target = $region44
        $region43: #{tpu_custom_call.1} parent=31 // pred_region
          %235 = dma.done %s228, 2048
        $region44: #{tpu_custom_call.1} parent=31 // pred_fallthru
          _
        %p236 = pneg %p52
        %p237 = pneg %p49
        %s238 = sand.u32 %s19, 1
        %s239 = scalar_lea.sflag [#allocation6], %s238
        %s240 = sand.u32 %s65, 1
        %s241 = smul.addr %s240, 256
        %s242 = scalar_lea.vmem [#allocation5], %s241
        %p243 = pneg %p78
        %p244 = pneg %p75
        %s245 = sand.u32 %s19, 1
        %s246 = scalar_lea.sflag [#allocation6], %s245
        %s247 = sand.u32 %s91, 1
        %s248 = smul.addr %s247, 128
        %s249 = scalar_lea.vmem [#allocation7], %s248
        %p250 = pneg %p104
        %p251 = pneg %p101
        %p252 = pneg %p130
        %p253 = pneg %p127
        %s254 = smul.u32 2, %s23
        %s255 = smul.u32 2, %s23
        %p256 = scmp.eq.s32.totalorder %s24, 0
        // Predicated region
        $region45: #{tpu_custom_call.1} parent=31 // pred_check
          %p257 = pneg %p256
        $region46: #{tpu_custom_call.1} parent=31 // pred_check_branch
          %259 = sbr.rel (%p257) target = $region48
        $region47: #{tpu_custom_call.1} parent=31 // pred_region
          %260 = vst [vmem:[#allocation8] sm:$0xff] 0.0
          %261 = vst [vmem:[#allocation8 + $0x8] sm:$0xff] 0.0
        $region48: #{tpu_custom_call.1} parent=31 // pred_fallthru
          _
        %v262 = vld [vmem:[#allocation2] sm:$0xff]
        %v263 = vld [vmem:[#allocation2 + $0x8] sm:$0xff]
        %v264 = vld [vmem:[%s222] sm:$0xff]
        %v265 = vld [vmem:[%s222 + $0x8] sm:$0xff]
        %v266 = vld [vmem:[%s222 + $0x10] sm:$0xff]
        %v267 = vld [vmem:[%s222 + $0x18] sm:$0xff]
        %v268 = vld [vmem:[%s222 + $0x20] sm:$0xff]
        %v269 = vld [vmem:[%s222 + $0x28] sm:$0xff]
        %v270 = vld [vmem:[%s222 + $0x30] sm:$0xff]
        %v271 = vld [vmem:[%s222 + $0x38] sm:$0xff]
        %v272 = vld [vmem:[%s222 + $0x40] sm:$0xff]
        %v273 = vld [vmem:[%s222 + $0x48] sm:$0xff]
        %v274 = vld [vmem:[%s222 + $0x50] sm:$0xff]
        %v275 = vld [vmem:[%s222 + $0x58] sm:$0xff]
        %v276 = vld [vmem:[%s222 + $0x60] sm:$0xff]
        %v277 = vld [vmem:[%s222 + $0x68] sm:$0xff]
        %v278 = vld [vmem:[%s222 + $0x70] sm:$0xff]
        %v279 = vld [vmem:[%s222 + $0x78] sm:$0xff]
        %v280 = vld [vmem:[%s222 + $0x80] sm:$0xff]
        %v281 = vld [vmem:[%s222 + $0x88] sm:$0xff]
        %v282 = vld [vmem:[%s222 + $0x90] sm:$0xff]
        %v283 = vld [vmem:[%s222 + $0x98] sm:$0xff]
        %v284 = vld [vmem:[%s222 + $0xa0] sm:$0xff]
        %v285 = vld [vmem:[%s222 + $0xa8] sm:$0xff]
        %v286 = vld [vmem:[%s222 + $0xb0] sm:$0xff]
        %v287 = vld [vmem:[%s222 + $0xb8] sm:$0xff]
        %v288 = vld [vmem:[%s222 + $0xc0] sm:$0xff]
        %v289 = vld [vmem:[%s222 + $0xc8] sm:$0xff]
        %v290 = vld [vmem:[%s222 + $0xd0] sm:$0xff]
        %v291 = vld [vmem:[%s222 + $0xd8] sm:$0xff]
        %v292 = vld [vmem:[%s222 + $0xe0] sm:$0xff]
        %v293 = vld [vmem:[%s222 + $0xe8] sm:$0xff]
        %v294 = vld [vmem:[%s222 + $0xf0] sm:$0xff]
        %v295 = vld [vmem:[%s222 + $0xf8] sm:$0xff]
        %296 = vmatprep.subr.mxu0 %v265
        %297 = vmatpush1.msra.mxu0 %v264
        %298 = vmatprep.subr.mxu0 %v267
        %299 = vmatpush1.msra.mxu0 %v266
        %300 = vmatprep.subr.mxu0 %v269
        %301 = vmatpush1.msra.mxu0 %v268
        %302 = vmatprep.subr.mxu0 %v271
        %303 = vmatpush1.msra.mxu0 %v270
        %304 = vmatprep.subr.mxu0 %v273
        %305 = vmatpush1.msra.mxu0 %v272
        %306 = vmatprep.subr.mxu0 %v275
        %307 = vmatpush1.msra.mxu0 %v274
        %308 = vmatprep.subr.mxu0 %v277
        %309 = vmatpush1.msra.mxu0 %v276
        %310 = vmatprep.subr.mxu0 %v279
        %311 = vmatpush1.msra.mxu0 %v278
        %312 = vmatprep.subr.mxu0 %v281
        %313 = vmatpush1.msra.mxu0 %v280
        %314 = vmatprep.subr.mxu0 %v283
        %315 = vmatpush1.msra.mxu0 %v282
        %316 = vmatprep.subr.mxu0 %v285
        %317 = vmatpush1.msra.mxu0 %v284
        %318 = vmatprep.subr.mxu0 %v287
        %319 = vmatpush1.msra.mxu0 %v286
        %320 = vmatprep.subr.mxu0 %v289
        %321 = vmatpush1.msra.mxu0 %v288
        %322 = vmatprep.subr.mxu0 %v291
        %323 = vmatpush1.msra.mxu0 %v290
        %324 = vmatprep.subr.mxu0 %v293
        %325 = vmatpush1.msra.mxu0 %v292
        %326 = vmatprep.subr.mxu0 %v295
        %327 = vmatpush1.msra.mxu0 %v294
        %328 = vmatprep.subr.mxu0 0.0
        %329 = vmatpush1.msra.mxu0 0.0
        %330 = vmatprep.subr.mxu0 0.0
        %331 = vmatpush1.msra.mxu0 0.0
        %332 = vmatprep.subr.mxu0 0.0
        %333 = vmatpush1.msra.mxu0 0.0
        %334 = vmatprep.subr.mxu0 0.0
        %335 = vmatpush1.msra.mxu0 0.0
        %336 = vmatprep.subr.mxu0 0.0
        %337 = vmatpush1.msra.mxu0 0.0
        %338 = vmatprep.subr.mxu0 0.0
        %339 = vmatpush1.msra.mxu0 0.0
        %340 = vmatprep.subr.mxu0 0.0
        %341 = vmatpush1.msra.mxu0 0.0
        %342 = vmatprep.subr.mxu0 0.0
        %343 = vmatpush1.msra.mxu0 0.0
        %344 = vmatprep.subr.mxu0 0.0
        %345 = vmatpush1.msra.mxu0 0.0
        %346 = vmatprep.subr.mxu0 0.0
        %347 = vmatpush1.msra.mxu0 0.0
        %348 = vmatprep.subr.mxu0 0.0
        %349 = vmatpush1.msra.mxu0 0.0
        %350 = vmatprep.subr.mxu0 0.0
        %351 = vmatpush1.msra.mxu0 0.0
        %352 = vmatprep.subr.mxu0 0.0
        %353 = vmatpush1.msra.mxu0 0.0
        %354 = vmatprep.subr.mxu0 0.0
        %355 = vmatpush1.msra.mxu0 0.0
        %356 = vmatprep.subr.mxu0 0.0
        %357 = vmatpush1.msra.mxu0 0.0
        %358 = vmatprep.subr.mxu0 0.0
        %359 = vmatpush1.msra.mxu0 0.0
        %360 = vmatprep.mubr.f32.mxu0 0.0
        %361 = vmatmul.mubr.f32.gmra.mrb[0].mxu0 %v262
        %v362 = vpop.f32.mrb[0].mxu0
        %v363 = vadd.f32 0.0, %v362
        %v364 = vpop.f32.mrb[0].mxu0
        %v365 = vadd.f32 0.0, %v364
        %366 = vmatprep.mubr.f32.mxu0 0.0
        %367 = vmatmul.mubr.f32.gmra.mrb[0].mxu0 %v263
        %v368 = vpop.f32.mrb[0].mxu0
        %v369 = vadd.f32 0.0, %v368
        %v370 = vpop.f32.mrb[0].mxu0
        %v371 = vadd.f32 0.0, %v370
        %372 = vdwg.mxu0
        %v373 = vxor.u32 %v363, 2147483648
        %v374 = vxor.u32 %v369, 2147483648
        %v375 = vmul.f32 %v373, 1.442695
        %v376 = vpow.pop %v375
        %v377 = vmul.f32 %v374, 1.442695
        %v378 = vpow.pop %v377
        %v379 = vadd.f32 %v376, 1.0
        %v380 = vadd.f32 %v378, 1.0
        %v381 = vrcp.pop %v379
        %v382 = vmul.f32 1.0, %v381
        %v383 = vrcp.pop %v380
        %v384 = vmul.f32 1.0, %v383
        %v385 = vmul.f32 %v363, %v382
        %v386 = vmul.f32 %v369, %v384
        %v387 = vmul.f32 %v385, %v365
        %v388 = vmul.f32 %v386, %v371
        %v389 = vld [vmem:[#allocation8] sm:$0xff]
        %v390 = vld [vmem:[#allocation8 + $0x8] sm:$0xff]
        %v391 = vld [vmem:[%s231] sm:$0xff]
        %v392 = vld [vmem:[%s231 + $0x8] sm:$0xff]
        %v393 = vld [vmem:[%s231 + $0x10] sm:$0xff]
        %v394 = vld [vmem:[%s231 + $0x18] sm:$0xff]
        %v395 = vld [vmem:[%s231 + $0x20] sm:$0xff]
        %v396 = vld [vmem:[%s231 + $0x28] sm:$0xff]
        %v397 = vld [vmem:[%s231 + $0x30] sm:$0xff]
        %v398 = vld [vmem:[%s231 + $0x38] sm:$0xff]
        %v399 = vld [vmem:[%s231 + $0x40] sm:$0xff]
        %v400 = vld [vmem:[%s231 + $0x48] sm:$0xff]
        %v401 = vld [vmem:[%s231 + $0x50] sm:$0xff]
        %v402 = vld [vmem:[%s231 + $0x58] sm:$0xff]
        %v403 = vld [vmem:[%s231 + $0x60] sm:$0xff]
        %v404 = vld [vmem:[%s231 + $0x68] sm:$0xff]
        %v405 = vld [vmem:[%s231 + $0x70] sm:$0xff]
        %v406 = vld [vmem:[%s231 + $0x78] sm:$0xff]
        %407 = vmatprep.subr.mxu0 0.0
        %408 = vmatpush1.msra.mxu0 %v391
        %409 = vmatprep.subr.mxu0 0.0
        %410 = vmatpush1.msra.mxu0 %v392
        %411 = vmatprep.subr.mxu0 0.0
        %412 = vmatpush1.msra.mxu0 %v393
        %413 = vmatprep.subr.mxu0 0.0
        %414 = vmatpush1.msra.mxu0 %v394
        %415 = vmatprep.subr.mxu0 0.0
        %416 = vmatpush1.msra.mxu0 %v395
        %417 = vmatprep.subr.mxu0 0.0
        %418 = vmatpush1.msra.mxu0 %v396
        %419 = vmatprep.subr.mxu0 0.0
        %420 = vmatpush1.msra.mxu0 %v397
        %421 = vmatprep.subr.mxu0 0.0
        %422 = vmatpush1.msra.mxu0 %v398
        %423 = vmatprep.subr.mxu0 0.0
        %424 = vmatpush1.msra.mxu0 %v399
        %425 = vmatprep.subr.mxu0 0.0
        %426 = vmatpush1.msra.mxu0 %v400
        %427 = vmatprep.subr.mxu0 0.0
        %428 = vmatpush1.msra.mxu0 %v401
        %429 = vmatprep.subr.mxu0 0.0
        %430 = vmatpush1.msra.mxu0 %v402
        %431 = vmatprep.subr.mxu0 0.0
        %432 = vmatpush1.msra.mxu0 %v403
        %433 = vmatprep.subr.mxu0 0.0
        %434 = vmatpush1.msra.mxu0 %v404
        %435 = vmatprep.subr.mxu0 0.0
        %436 = vmatpush1.msra.mxu0 %v405
        %437 = vmatprep.subr.mxu0 0.0
        %438 = vmatpush1.msra.mxu0 %v406
        %439 = vmatprep.subr.mxu0 0.0
        %440 = vmatpush1.msra.mxu0 0.0
        %441 = vmatprep.subr.mxu0 0.0
        %442 = vmatpush1.msra.mxu0 0.0
        %443 = vmatprep.subr.mxu0 0.0
        %444 = vmatpush1.msra.mxu0 0.0
        %445 = vmatprep.subr.mxu0 0.0
        %446 = vmatpush1.msra.mxu0 0.0
        %447 = vmatprep.subr.mxu0 0.0
        %448 = vmatpush1.msra.mxu0 0.0
        %449 = vmatprep.subr.mxu0 0.0
        %450 = vmatpush1.msra.mxu0 0.0
        %451 = vmatprep.subr.mxu0 0.0
        %452 = vmatpush1.msra.mxu0 0.0
        %453 = vmatprep.subr.mxu0 0.0
        %454 = vmatpush1.msra.mxu0 0.0
        %455 = vmatprep.subr.mxu0 0.0
        %456 = vmatpush1.msra.mxu0 0.0
        %457 = vmatprep.subr.mxu0 0.0
        %458 = vmatpush1.msra.mxu0 0.0
        %459 = vmatprep.subr.mxu0 0.0
        %460 = vmatpush1.msra.mxu0 0.0
        %461 = vmatprep.subr.mxu0 0.0
        %462 = vmatpush1.msra.mxu0 0.0
        %463 = vmatprep.subr.mxu0 0.0
        %464 = vmatpush1.msra.mxu0 0.0
        %465 = vmatprep.subr.mxu0 0.0
        %466 = vmatpush1.msra.mxu0 0.0
        %467 = vmatprep.subr.mxu0 0.0
        %468 = vmatpush1.msra.mxu0 0.0
        %469 = vmatprep.subr.mxu0 0.0
        %470 = vmatpush1.msra.mxu0 0.0
        %471 = vmatprep.mubr.f32.mxu0 0.0
        %472 = vmatmul.mubr.f32.gmra.mrb[0].mxu0 %v387
        %v473 = vpop.f32.mrb[0].mxu0
        %v474 = vadd.f32 0.0, %v473
        %v475 = vpop.f32.mrb[0].mxu0
        %476 = vmatprep.mubr.f32.mxu0 0.0
        %477 = vmatmul.mubr.f32.gmra.mrb[0].mxu0 %v388
        %v478 = vpop.f32.mrb[0].mxu0
        %v479 = vadd.f32 0.0, %v478
        %v480 = vpop.f32.mrb[0].mxu0
        %481 = vdwg.mxu0
        %v482 = vadd.f32 %v389, %v474
        %v483 = vadd.f32 %v390, %v479
        %484 = vst [vmem:[#allocation8] sm:$0xff] %v482
        %485 = vst [vmem:[#allocation8 + $0x8] sm:$0xff] %v483
        // Predicated region
        $region49: #{tpu_custom_call.1} parent=31 // pred_check
          %p486 = pneg %p127
        $region50: #{tpu_custom_call.1} parent=31 // pred_check_branch
          %488 = sbr.rel (%p486) target = $region52
        $region51: #{tpu_custom_call.1} parent=31 // pred_region
          %s489 = smul.u32 2, %s23
          %s491 = ssub.s32 256, 256
          %492 = vsyncadd [#allocation4], %s491
          %s493 = smul.addr %s489, 128
          %s494 = scalar_lea.hbm %s3, %s493
          %s495 = sshll.u32 [#allocation8], 4
          %s496 = int_to_ptr.vmem [resolvable:$true] %s495
          %501 = dma.vmem_to_hbm [thread:$0]  %s496, 256, %s494, [#allocation4], 128, 128, 8
        $region52: #{tpu_custom_call.1} parent=31 // pred_fallthru
          _
        // Predicated region
        $region53: #{tpu_custom_call.1} parent=31 // pred_check
          %p502 = pneg %p127
        $region54: #{tpu_custom_call.1} parent=31 // pred_check_branch
          %504 = sbr.rel (%p502) target = $region56
        $region55: #{tpu_custom_call.1} parent=31 // pred_region
          %505 = dma.done [#allocation4], 256
        $region56: #{tpu_custom_call.1} parent=31 // pred_fallthru
          _
      $region32: #{tpu_custom_call.1} parent=5 // pred_fallthru
        _
      %p506 = scmp.le.s32.totalorder 2, %s14
      // Predicated region
      $region57: #{tpu_custom_call.1} parent=5 // pred_check
        %p507 = pneg %p506
      $region58: #{tpu_custom_call.1} parent=5 // pred_check_branch
        %509 = sbr.rel (%p507) target = $region60
      $region59: #{tpu_custom_call.1} parent=5 // pred_region
        %s510 = ssub.s32 %s14, 2
      $region60: #{tpu_custom_call.1} parent=5 // pred_fallthru
        _
    $region6: #{tpu_custom_call.1} parent=1 // loop_footer
      %s18 = sadd.s32 1, %s14
    $region7: #{tpu_custom_call.1} parent=1 // loop_footer_branch
      %13 = sbr.rel target = $region3
    $region8: #{tpu_custom_call.1} parent=1 // loop_exit
      _
    %511 = vsyncpa [#allocation3], 1
    %s512 = scalar_lea.sflag [#allocation3], 1
    %513 = vsyncpa %s512, 1
    %514 = vsyncpa [#allocation6], 1
    %s515 = scalar_lea.sflag [#allocation6], 1
    %516 = vsyncpa %s515, 1
    %517 = vsyncpa [#allocation4], 1
    %s518 = scalar_lea.sflag [#allocation4], 1
    %519 = vsyncpa %s518, 1

</llo_original>
